<compile_context>
chip_gen: v6e
topology: v6e:2x2x1
jax: 0.10.0
libtpu: 0.0.40
codegen_flags: <defaults>
</compile_context>

<pallas_src>
import functools

import jax
import jax.numpy as jnp
from jax.experimental import pallas as pl
from jax.experimental.pallas import tpu as pltpu


def _round_up(x, m):
    return ((x + m - 1) // m) * m


def _choose_row_tile(bn_pad, cap=1024, min_blocks=8):
    """Largest multiple-of-8 divisor of bn_pad that is <= cap and (when possible)
    gives >= min_blocks grid steps: enough blocks for v7x megacore + DMA overlap,
    big tiles for v6e/v5e, and never above the 16 MiB scoped-VMEM budget."""
    target = max(8, min(cap, _round_up(pl.cdiv(bn_pad, min_blocks), 8)))
    best = 8
    t = 8
    while t <= min(target, bn_pad):
        if bn_pad % t == 0:
            best = t
        t += 8
    return best


# ----------------------------------------------------------------------------- kernel
def worker_kernel(feat_ref, goal_ref, h_ref,
                  wih_f_ref, wih_g_ref, whh_ref, b_ih_ref, b_hn_ref,
                  wfc_ref, bfc_ref,
                  logits_ref, hnew_ref):
    """One GRU cell step + output Linear on a tile of rows.

    feat_ref : [T, F]          goal_ref : [T, G]          h_ref : [T, HP]  (bf16)
    wih_f_ref: [F, 3*HP] bf16  wih_g_ref: [G, 3*HP] bf16  whh_ref: [HP, 3*HP] bf16
    b_ih_ref : [1, 3*HP] f32 (b_hh's r,z parts already folded in)
    b_hn_ref : [1, HP]   f32 (n-gate hidden bias, scaled by r below)
    wfc_ref  : [HP, AP] bf16   bfc_ref : [1, AP] f32
    logits_ref: [T, AP] bf16   hnew_ref : [T, HP] bf16
    Gate order (PyTorch GRU): r, z, n; each gate on its own 128-lane stride HP.
    """
    HP = hnew_ref.shape[-1]

    h_bf = h_ref[...]                                # bf16 carried state
    feat_b = feat_ref[...].astype(jnp.bfloat16)      # no-op if producer emits bf16
    goal_b = goal_ref[...].astype(jnp.bfloat16)

    # Split input->gate matmul (no concat anywhere); f32 accumulation.
    gx = (jnp.dot(feat_b, wih_f_ref[...], preferred_element_type=jnp.float32)
          + jnp.dot(goal_b, wih_g_ref[...], preferred_element_type=jnp.float32)
          + b_ih_ref[...])
    gh = jnp.dot(h_bf, whh_ref[...], preferred_element_type=jnp.float32)

    # Gate slices are whole-vreg (128-lane) aligned thanks to the HP stride.
    r = jax.nn.sigmoid(gx[:, 0:HP] + gh[:, 0:HP])
    z = jax.nn.sigmoid(gx[:, HP:2 * HP] + gh[:, HP:2 * HP])
    n = jnp.tanh(gx[:, 2 * HP:3 * HP] + r * (gh[:, 2 * HP:3 * HP] + b_hn_ref[...]))

    h_new = (1.0 - z) * n + z * h_bf.astype(jnp.float32)   # f32 blend (v5e-safe)

    h_new_bf = h_new.astype(jnp.bfloat16)
    logits = (jnp.dot(h_new_bf, wfc_ref[...], preferred_element_type=jnp.float32)
              + bfc_ref[...])

    hnew_ref[...] = h_new_bf                           # bf16 [T, HP] full-lane store
    logits_ref[...] = logits.astype(jnp.bfloat16)      # bf16 [T, AP] full-lane store


# ----------------------------------------------------------------------------- wrapper
def worker_forward(features, goals, h_padded, kp, *, action_dim):
    """features [B,A,F], goals [B,A,G], h_padded [BN_pad, HP] bf16 (kernel-layout
    state carried across timesteps) ->
    (action_logits [B,A,action_dim] bf16, new h_padded [BN_pad, HP] bf16)."""
    B, A, Fdim = features.shape
    Gdim = goals.shape[-1]
    BN = B * A
    BN_pad, HP = h_padded.shape
    AP = kp["w_fc"].shape[1]

    tile_bn = _choose_row_tile(BN_pad)
    grid = (BN_pad // tile_bn,)

    feat2 = features.reshape(BN, Fdim)
    goal2 = goals.reshape(BN, Gdim)
    if BN_pad != BN:                                   # only when BN % 8 != 0
        pad = BN_pad - BN
        feat2 = jnp.pad(feat2, ((0, pad), (0, 0)))
        goal2 = jnp.pad(goal2, ((0, pad), (0, 0)))

    row_spec = lambda cols: pl.BlockSpec((tile_bn, cols), lambda i: (i, 0))
    const_spec = lambda shape: pl.BlockSpec(shape, lambda i: (0, 0))

    logits_pad, h_new_padded = pl.pallas_call(
        worker_kernel,
        out_shape=(jax.ShapeDtypeStruct((BN_pad, AP), jnp.bfloat16),
                   jax.ShapeDtypeStruct((BN_pad, HP), jnp.bfloat16)),
        grid=grid,
        in_specs=[
            row_spec(Fdim),                 # features tile
            row_spec(Gdim),                 # goals tile
            row_spec(HP),                   # hidden tile (aliased to output 1)
            const_spec((Fdim, 3 * HP)),     # W_ih (feature part), bf16
            const_spec((Gdim, 3 * HP)),     # W_ih (goal part), bf16
            const_spec((HP, 3 * HP)),       # W_hh, bf16
            const_spec((1, 3 * HP)),        # b_ih (+ b_hh r,z folded), f32
            const_spec((1, HP)),            # b_hn, f32
            const_spec((HP, AP)),           # W_fc, bf16
            const_spec((1, AP)),            # b_fc, f32
        ],
        out_specs=[row_spec(AP), row_spec(HP)],
        input_output_aliases={2: 1},        # hidden state updated in place
        compiler_params=pltpu.CompilerParams(
            dimension_semantics=("parallel",)),
    )(feat2, goal2, h_padded,
      kp["w_ih_feat"], kp["w_ih_goal"], kp["w_hh"],
      kp["b_ih"], kp["b_hn"], kp["w_fc"], kp["b_fc"])

    # Module-API output only; downstream consumers that can take the padded
    # [BN_pad, AP] bf16 buffer directly should, to skip this slice pass.
    action_logits = logits_pad[:BN, :action_dim].reshape(B, A, action_dim)
    return action_logits, h_new_padded


# ---------------------------------------------------------------- state layout helpers
def pack_hidden(hidden_state, hidden_dim_padded):
    """[1, BN, H] -> carried kernel-layout state [BN_pad, HP] bf16.
    Episode-boundary conversion only (never per step)."""
    _, BN, H = hidden_state.shape
    BN_pad = _round_up(BN, 8)
    h = hidden_state.reshape(BN, H)
    h = jnp.pad(h, ((0, BN_pad - BN), (0, hidden_dim_padded - H)))
    return h.astype(jnp.bfloat16)


def unpack_hidden(h_padded, BN, H):
    """Carried state [BN_pad, HP] bf16 -> [1, BN, H] f32 (episode boundary only)."""
    return h_padded[:BN, :H].astype(jnp.float32).reshape(1, BN, H)


# ----------------------------------------------------------------------------- params
def init_params(key, feature_dim, goal_dim, hidden_dim, action_dim):
    """Synthetic params in 'natural' (transposed PyTorch) shapes, gate order r,z,n."""
    in_dim = feature_dim + goal_dim
    ks = jax.random.split(key, 6)
    s = 1.0 / jnp.sqrt(hidden_dim)
    return {
        "w_ih_t": jax.random.uniform(ks[0], (in_dim, 3 * hidden_dim), jnp.float32, -s, s),
        "w_hh_t": jax.random.uniform(ks[1], (hidden_dim, 3 * hidden_dim), jnp.float32, -s, s),
        "b_ih":   jax.random.uniform(ks[2], (1, 3 * hidden_dim), jnp.float32, -s, s),
        "b_hh":   jax.random.uniform(ks[3], (1, 3 * hidden_dim), jnp.float32, -s, s),
        "w_fc_t": jax.random.uniform(ks[4], (hidden_dim, action_dim), jnp.float32, -s, s),
        "b_fc":   jax.random.uniform(ks[5], (1, action_dim), jnp.float32, -s, s),
    }


def prepare_params(raw, feature_dim, goal_dim, hidden_dim, action_dim):
    """Repack params for the kernel: per-gate 128-lane stride, 128-lane padded
    hidden/action dims, weights bf16, biases f32, b_hh(r,z) folded into b_ih."""
    H = hidden_dim
    HP = _round_up(H, 128)
    AP = _round_up(action_dim, 128)

    def pad_gate_cols(w):                      # [rows, 3H] -> [rows, 3*HP]
        out = jnp.zeros((w.shape[0], 3 * HP), jnp.float32)
        for g in range(3):
            out = out.at[:, g * HP:g * HP + H].set(w[:, g * H:(g + 1) * H])
        return out

    w_ih_p = pad_gate_cols(raw["w_ih_t"])                       # [F+G, 3*HP]
    w_hh_p = jnp.zeros((HP, 3 * HP), jnp.float32).at[:H].set(pad_gate_cols(raw["w_hh_t"]))
    w_fc_p = jnp.zeros((HP, AP), jnp.float32).at[:H, :action_dim].set(raw["w_fc_t"])
    b_fc_p = jnp.zeros((1, AP), jnp.float32).at[:, :action_dim].set(raw["b_fc"])

    # Fold b_hh's r,z parts into b_ih (they always add); keep only b_hn separate
    # because PyTorch's n gate computes  tanh(W_in x + b_in + r*(W_hn h + b_hn)).
    b_ih, b_hh = raw["b_ih"], raw["b_hh"]
    b_comb = jnp.concatenate(
        [b_ih[:, :2 * H] + b_hh[:, :2 * H], b_ih[:, 2 * H:]], axis=-1)
    b_hn_p = jnp.zeros((1, HP), jnp.float32).at[:, :H].set(b_hh[:, 2 * H:])

    return {
        "w_ih_feat": w_ih_p[:feature_dim].astype(jnp.bfloat16),
        "w_ih_goal": w_ih_p[feature_dim:].astype(jnp.bfloat16),
        "w_hh": w_hh_p.astype(jnp.bfloat16),
        "b_ih": pad_gate_cols(b_comb),
        "b_hn": b_hn_p,
        "w_fc": w_fc_p.astype(jnp.bfloat16),
        "b_fc": b_fc_p,
    }


# ----------------------------------------------------------------------------- reference
def reference_forward(features, goals, hidden_state, raw, hidden_dim, action_dim):
    """Pure-JAX GRU cell + Linear (bf16 MXU operands, f32 accumulation)."""
    B, A, Fdim = features.shape
    BN = B * A
    H = hidden_dim
    bf = jnp.bfloat16
    x = jnp.concatenate([features, goals], -1).reshape(BN, -1)
    h = hidden_state.reshape(BN, H)
    gx = jnp.dot(x.astype(bf), raw["w_ih_t"].astype(bf),
                 preferred_element_type=jnp.float32) + raw["b_ih"]
    gh = jnp.dot(h.astype(bf), raw["w_hh_t"].astype(bf),
                 preferred_element_type=jnp.float32) + raw["b_hh"]
    r = jax.nn.sigmoid(gx[:, :H] + gh[:, :H])
    z = jax.nn.sigmoid(gx[:, H:2 * H] + gh[:, H:2 * H])
    n = jnp.tanh(gx[:, 2 * H:] + r * gh[:, 2 * H:])
    h_new = (1.0 - z) * n + z * h
    logits = jnp.dot(h_new.astype(bf), raw["w_fc_t"].astype(bf),
                     preferred_element_type=jnp.float32) + raw["b_fc"]
    return logits.reshape(B, A, action_dim), h_new.reshape(1, BN, H)


# ----------------------------------------------------------------------------- demo
if __name__ == "__main__":
    batch_size, n_agents = 2, 4
    feature_dim, goal_dim, hidden_dim, action_dim = 12, 4, 32, 8

    key = jax.random.PRNGKey(0)
    k_feat, k_goal, k_hid, k_par = jax.random.split(key, 4)

    features = jax.random.normal(k_feat, (batch_size, n_agents, feature_dim), jnp.float32)
    goals = jax.random.normal(k_goal, (batch_size, n_agents, goal_dim), jnp.float32)
    hidden_state = jax.random.normal(
        k_hid, (1, batch_size * n_agents, hidden_dim), jnp.float32)

    raw = init_params(k_par, feature_dim, goal_dim, hidden_dim, action_dim)
    kp = prepare_params(raw, feature_dim, goal_dim, hidden_dim, action_dim)

    BN = batch_size * n_agents
    HP = kp["w_hh"].shape[0]

    # Episode-boundary conversion into the carried padded bf16 state layout.
    h_padded = pack_hidden(hidden_state, HP)

    fwd = jax.jit(functools.partial(worker_forward, action_dim=action_dim),
                  donate_argnums=(2,))
    action_logits, h_padded_new = fwd(features, goals, h_padded, kp)
    jax.block_until_ready((action_logits, h_padded_new))

    new_hidden = unpack_hidden(h_padded_new, BN, hidden_dim)

    assert action_logits.shape == (batch_size, n_agents, action_dim)
    assert new_hidden.shape == (1, BN, hidden_dim)

    ref_logits, ref_hidden = reference_forward(
        features, goals, hidden_state, raw, hidden_dim, action_dim)
    assert jnp.allclose(action_logits.astype(jnp.float32), ref_logits,
                        atol=3e-2, rtol=3e-2)
    assert jnp.allclose(new_hidden, ref_hidden, atol=2e-2, rtol=2e-2)

    print("KERNEL_OK")
</pallas_src>

<mosaic_0001>
module attributes {stable_mosaic.version = 11 : i64} {
  func.func @worker_kernel(%arg0: i32, %arg1: memref<8x12xf32, #tpu.memory_space<vmem>>, %arg2: memref<8x4xf32, #tpu.memory_space<vmem>>, %arg3: memref<8x128xbf16, #tpu.memory_space<vmem>>, %arg4: memref<12x384xbf16, #tpu.memory_space<vmem>>, %arg5: memref<4x384xbf16, #tpu.memory_space<vmem>>, %arg6: memref<128x384xbf16, #tpu.memory_space<vmem>>, %arg7: memref<1x384xf32, #tpu.memory_space<vmem>>, %arg8: memref<1x128xf32, #tpu.memory_space<vmem>>, %arg9: memref<128x128xbf16, #tpu.memory_space<vmem>>, %arg10: memref<1x128xf32, #tpu.memory_space<vmem>>, %arg11: memref<8x128xbf16, #tpu.memory_space<vmem>>, %arg12: memref<8x128xbf16, #tpu.memory_space<vmem>>) attributes {dimension_semantics = [#tpu.dimension_semantics<parallel>], iteration_bounds = array<i64: 1>, scalar_prefetch = 0 : i64, scratch_operands = 0 : i64, tpu.core_type = #tpu.core_type<tc>, window_params = [{transform_indices = @transform_0, window_bounds = array<i64: 8, 12>}, {transform_indices = @transform_1, window_bounds = array<i64: 8, 4>}, {transform_indices = @transform_2, window_bounds = array<i64: 8, 128>}, {pipeline_mode = #tpu.pipeline_mode<synchronous>, transform_indices = @transform_3, window_bounds = array<i64: 12, 384>}, {pipeline_mode = #tpu.pipeline_mode<synchronous>, transform_indices = @transform_4, window_bounds = array<i64: 4, 384>}, {pipeline_mode = #tpu.pipeline_mode<synchronous>, transform_indices = @transform_5, window_bounds = array<i64: 128, 384>}, {pipeline_mode = #tpu.pipeline_mode<synchronous>, transform_indices = @transform_6, window_bounds = array<i64: 1, 384>}, {pipeline_mode = #tpu.pipeline_mode<synchronous>, transform_indices = @transform_7, window_bounds = array<i64: 1, 128>}, {pipeline_mode = #tpu.pipeline_mode<synchronous>, transform_indices = @transform_8, window_bounds = array<i64: 128, 128>}, {pipeline_mode = #tpu.pipeline_mode<synchronous>, transform_indices = @transform_9, window_bounds = array<i64: 1, 128>}, {transform_indices = @transform_10, window_bounds = array<i64: 8, 128>}, {transform_indices = @transform_11, window_bounds = array<i64: 8, 128>}]} {
    %c0 = arith.constant 0 : index
    %c0_0 = arith.constant 0 : index
    %0 = vector.load %arg3[%c0, %c0_0] : memref<8x128xbf16, #tpu.memory_space<vmem>>, vector<8x128xbf16>
    %c0_1 = arith.constant 0 : index
    %c0_2 = arith.constant 0 : index
    %1 = vector.load %arg1[%c0_1, %c0_2] : memref<8x12xf32, #tpu.memory_space<vmem>>, vector<8x12xf32>
    %2 = arith.truncf %1 : vector<8x12xf32> to vector<8x12xbf16>
    %c0_3 = arith.constant 0 : index
    %c0_4 = arith.constant 0 : index
    %3 = vector.load %arg2[%c0_3, %c0_4] : memref<8x4xf32, #tpu.memory_space<vmem>>, vector<8x4xf32>
    %4 = arith.truncf %3 : vector<8x4xf32> to vector<8x4xbf16>
    %c0_5 = arith.constant 0 : index
    %c0_6 = arith.constant 0 : index
    %5 = vector.load %arg4[%c0_5, %c0_6] : memref<12x384xbf16, #tpu.memory_space<vmem>>, vector<12x384xbf16>
    %cst = arith.constant dense<0.000000e+00> : vector<8x384xf32>
    %6 = tpu.matmul %2, %5, %cst {dimension_numbers = #tpu.dot_dimension_numbers<[1], [0], [0], [1], [0, 0, 1, 1], [], []>} : vector<8x12xbf16>, vector<12x384xbf16>, vector<8x384xf32> -> vector<8x384xf32>
    %c0_7 = arith.constant 0 : index
    %c0_8 = arith.constant 0 : index
    %7 = vector.load %arg5[%c0_7, %c0_8] : memref<4x384xbf16, #tpu.memory_space<vmem>>, vector<4x384xbf16>
    %cst_9 = arith.constant dense<0.000000e+00> : vector<8x384xf32>
    %8 = tpu.matmul %4, %7, %cst_9 {dimension_numbers = #tpu.dot_dimension_numbers<[1], [0], [0], [1], [0, 0, 1, 1], [], []>} : vector<8x4xbf16>, vector<4x384xbf16>, vector<8x384xf32> -> vector<8x384xf32>
    %9 = arith.addf %6, %8 : vector<8x384xf32>
    %c0_10 = arith.constant 0 : index
    %c0_11 = arith.constant 0 : index
    %10 = vector.load %arg7[%c0_10, %c0_11] : memref<1x384xf32, #tpu.memory_space<vmem>>, vector<1x384xf32>
    %11 = vector.broadcast %10 : vector<1x384xf32> to vector<8x384xf32>
    %12 = arith.addf %9, %11 : vector<8x384xf32>
    %c0_12 = arith.constant 0 : index
    %c0_13 = arith.constant 0 : index
    %13 = vector.load %arg6[%c0_12, %c0_13] : memref<128x384xbf16, #tpu.memory_space<vmem>>, vector<128x384xbf16>
    %cst_14 = arith.constant dense<0.000000e+00> : vector<8x384xf32>
    %14 = tpu.matmul %0, %13, %cst_14 {dimension_numbers = #tpu.dot_dimension_numbers<[1], [0], [0], [1], [0, 0, 1, 1], [], []>} : vector<8x128xbf16>, vector<128x384xbf16>, vector<8x384xf32> -> vector<8x384xf32>
    %15 = vector.extract_strided_slice %12 {offsets = [0, 0], sizes = [8, 128], strides = [1, 1]} : vector<8x384xf32> to vector<8x128xf32>
    %16 = vector.extract_strided_slice %14 {offsets = [0, 0], sizes = [8, 128], strides = [1, 1]} : vector<8x384xf32> to vector<8x128xf32>
    %17 = arith.addf %15, %16 : vector<8x128xf32>
    %18 = arith.negf %17 : vector<8x128xf32>
    %19 = math.exp %18 : vector<8x128xf32>
    %cst_15 = arith.constant 1.000000e+00 : f32
    %20 = vector.broadcast %cst_15 : f32 to vector<8x128xf32>
    %21 = arith.addf %20, %19 : vector<8x128xf32>
    %22 = arith.divf %20, %21 : vector<8x128xf32>
    %23 = vector.extract_strided_slice %12 {offsets = [0, 128], sizes = [8, 128], strides = [1, 1]} : vector<8x384xf32> to vector<8x128xf32>
    %24 = vector.extract_strided_slice %14 {offsets = [0, 128], sizes = [8, 128], strides = [1, 1]} : vector<8x384xf32> to vector<8x128xf32>
    %25 = arith.addf %23, %24 : vector<8x128xf32>
    %26 = arith.negf %25 : vector<8x128xf32>
    %27 = math.exp %26 : vector<8x128xf32>
    %cst_16 = arith.constant 1.000000e+00 : f32
    %28 = vector.broadcast %cst_16 : f32 to vector<8x128xf32>
    %29 = arith.addf %28, %27 : vector<8x128xf32>
    %30 = arith.divf %28, %29 : vector<8x128xf32>
    %31 = vector.extract_strided_slice %12 {offsets = [0, 256], sizes = [8, 128], strides = [1, 1]} : vector<8x384xf32> to vector<8x128xf32>
    %32 = vector.extract_strided_slice %14 {offsets = [0, 256], sizes = [8, 128], strides = [1, 1]} : vector<8x384xf32> to vector<8x128xf32>
    %c0_17 = arith.constant 0 : index
    %c0_18 = arith.constant 0 : index
    %33 = vector.load %arg8[%c0_17, %c0_18] : memref<1x128xf32, #tpu.memory_space<vmem>>, vector<1x128xf32>
    %34 = vector.broadcast %33 : vector<1x128xf32> to vector<8x128xf32>
    %35 = arith.addf %32, %34 : vector<8x128xf32>
    %36 = arith.mulf %22, %35 : vector<8x128xf32>
    %37 = arith.addf %31, %36 : vector<8x128xf32>
    %38 = math.tanh %37 : vector<8x128xf32>
    %cst_19 = arith.constant 1.000000e+00 : f32
    %39 = vector.broadcast %cst_19 : f32 to vector<8x128xf32>
    %40 = arith.subf %39, %30 : vector<8x128xf32>
    %41 = arith.mulf %40, %38 : vector<8x128xf32>
    %42 = arith.extf %0 : vector<8x128xbf16> to vector<8x128xf32>
    %43 = arith.mulf %30, %42 : vector<8x128xf32>
    %44 = arith.addf %41, %43 : vector<8x128xf32>
    %45 = arith.truncf %44 : vector<8x128xf32> to vector<8x128xbf16>
    %c0_20 = arith.constant 0 : index
    %c0_21 = arith.constant 0 : index
    %46 = vector.load %arg9[%c0_20, %c0_21] : memref<128x128xbf16, #tpu.memory_space<vmem>>, vector<128x128xbf16>
    %cst_22 = arith.constant dense<0.000000e+00> : vector<8x128xf32>
    %47 = tpu.matmul %45, %46, %cst_22 {dimension_numbers = #tpu.dot_dimension_numbers<[1], [0], [0], [1], [0, 0, 1, 1], [], []>} : vector<8x128xbf16>, vector<128x128xbf16>, vector<8x128xf32> -> vector<8x128xf32>
    %c0_23 = arith.constant 0 : index
    %c0_24 = arith.constant 0 : index
    %48 = vector.load %arg10[%c0_23, %c0_24] : memref<1x128xf32, #tpu.memory_space<vmem>>, vector<1x128xf32>
    %49 = vector.broadcast %48 : vector<1x128xf32> to vector<8x128xf32>
    %50 = arith.addf %47, %49 : vector<8x128xf32>
    %c0_25 = arith.constant 0 : index
    %c0_26 = arith.constant 0 : index
    %51 = vector.load %arg12[%c0_25, %c0_26] : memref<8x128xbf16, #tpu.memory_space<vmem>>, vector<8x128xbf16>
    tpu.vector_store %arg12[%c0_25, %c0_26], %45 {strides = array<i32>} : memref<8x128xbf16, #tpu.memory_space<vmem>>, vector<8x128xbf16>,
    %52 = arith.truncf %50 : vector<8x128xf32> to vector<8x128xbf16>
    %c0_27 = arith.constant 0 : index
    %c0_28 = arith.constant 0 : index
    %53 = vector.load %arg11[%c0_27, %c0_28] : memref<8x128xbf16, #tpu.memory_space<vmem>>, vector<8x128xbf16>
    tpu.vector_store %arg11[%c0_27, %c0_28], %52 {strides = array<i32>} : memref<8x128xbf16, #tpu.memory_space<vmem>>, vector<8x128xbf16>,
    return
  }
  func.func @transform_0(%arg0: i32) -> (i32, i32) {
    %c0_i32 = arith.constant 0 : i32
    %c0_i32_0 = arith.constant 0 : i32
    return %arg0, %c0_i32 : i32, i32
  }
  func.func @transform_1(%arg0: i32) -> (i32, i32) {
    %c0_i32 = arith.constant 0 : i32
    %c0_i32_0 = arith.constant 0 : i32
    return %arg0, %c0_i32 : i32, i32
  }
  func.func @transform_2(%arg0: i32) -> (i32, i32) {
    %c0_i32 = arith.constant 0 : i32
    %c0_i32_0 = arith.constant 0 : i32
    return %arg0, %c0_i32 : i32, i32
  }
  func.func @transform_3(%arg0: i32) -> (i32, i32) {
    %c0_i32 = arith.constant 0 : i32
    %c0_i32_0 = arith.constant 0 : i32
    %c0_i32_1 = arith.constant 0 : i32
    return %c0_i32, %c0_i32_0 : i32, i32
  }
  func.func @transform_4(%arg0: i32) -> (i32, i32) {
    %c0_i32 = arith.constant 0 : i32
    %c0_i32_0 = arith.constant 0 : i32
    %c0_i32_1 = arith.constant 0 : i32
    return %c0_i32, %c0_i32_0 : i32, i32
  }
  func.func @transform_5(%arg0: i32) -> (i32, i32) {
    %c0_i32 = arith.constant 0 : i32
    %c0_i32_0 = arith.constant 0 : i32
    %c0_i32_1 = arith.constant 0 : i32
    return %c0_i32, %c0_i32_0 : i32, i32
  }
  func.func @transform_6(%arg0: i32) -> (i32, i32) {
    %c0_i32 = arith.constant 0 : i32
    %c0_i32_0 = arith.constant 0 : i32
    %c0_i32_1 = arith.constant 0 : i32
    return %c0_i32, %c0_i32_0 : i32, i32
  }
  func.func @transform_7(%arg0: i32) -> (i32, i32) {
    %c0_i32 = arith.constant 0 : i32
    %c0_i32_0 = arith.constant 0 : i32
    %c0_i32_1 = arith.constant 0 : i32
    return %c0_i32, %c0_i32_0 : i32, i32
  }
  func.func @transform_8(%arg0: i32) -> (i32, i32) {
    %c0_i32 = arith.constant 0 : i32
    %c0_i32_0 = arith.constant 0 : i32
    %c0_i32_1 = arith.constant 0 : i32
    return %c0_i32, %c0_i32_0 : i32, i32
  }
  func.func @transform_9(%arg0: i32) -> (i32, i32) {
    %c0_i32 = arith.constant 0 : i32
    %c0_i32_0 = arith.constant 0 : i32
    %c0_i32_1 = arith.constant 0 : i32
    return %c0_i32, %c0_i32_0 : i32, i32
  }
  func.func @transform_10(%arg0: i32) -> (i32, i32) {
    %c0_i32 = arith.constant 0 : i32
    %c0_i32_0 = arith.constant 0 : i32
    return %arg0, %c0_i32 : i32, i32
  }
  func.func @transform_11(%arg0: i32) -> (i32, i32) {
    %c0_i32 = arith.constant 0 : i32
    %c0_i32_0 = arith.constant 0 : i32
    return %arg0, %c0_i32 : i32, i32
  }
}

</mosaic_0001>

<llo_original>
// kernel: worker_forward.1
$region0: #{worker_forward.1}
  #allocation0 [shape = 'u32[]', space=smem, size = 0x4, offset = 0x4, fixed_abs, tag = 'smem constant byte address 0x4 - core index']
  #allocation1 [shape = 'u32[144,128]{1,0:T(1,128)}', space=vmem, size = 0x12000, scoped, tag = 'internal scratch']
  %s0 = inlined_call_operand.hbm [shape: f32[8,12], index: 0, kind: input, shape index: {}]
  %s1 = inlined_call_operand.hbm [shape: f32[8,4], index: 1, kind: input, shape index: {}]
  %s2 = inlined_call_operand.vmem [shape: bf16[8,128], index: 2, kind: input, shape index: {}, may-alias: {2,11}]
  %s3 = inlined_call_operand.hbm [shape: bf16[12,384], index: 3, kind: input, shape index: {}]
  %s4 = inlined_call_operand.vmem [shape: bf16[4,384], index: 4, kind: input, shape index: {}]
  %s5 = inlined_call_operand.hbm [shape: bf16[128,384], index: 5, kind: input, shape index: {}]
  %s6 = inlined_call_operand.hbm [shape: f32[1,384], index: 6, kind: input, shape index: {}]
  %s7 = inlined_call_operand.vmem [shape: f32[1,128], index: 7, kind: input, shape index: {}]
  %s8 = inlined_call_operand.hbm [shape: bf16[128,128], index: 8, kind: input, shape index: {}]
  %s9 = inlined_call_operand.vmem [shape: f32[1,128], index: 9, kind: input, shape index: {}]
  %s10 = inlined_call_operand.hbm [shape: bf16[8,128], index: 10, kind: output, shape index: {0}]
  %s11 = inlined_call_operand.vmem [shape: bf16[8,128], index: 11, kind: output, shape index: {1}, may-alias: {2,11}]
  %12 = xla_tuple %s10, %s11
  %s13 = sld [smem:[#allocation0]]
  $region82: #{worker_forward.1} parent=0
    _
  %s15 = ssub.s32 1, %s13
  %s16 = scalar_select 0, %s15, %s13
  $region1: #{worker_forward.1} parent=0
    #allocation2 [shape = 'u8[4096]{0}', space=vmem, size = 0x1000, scoped, tag = 'input window, operand 0, single buffered']
    #allocation3 [shape = 's32[1]{0}', space=sflag, size = 0x4, scoped, tag = 'scoped memory for worker_forward.1']
    #allocation4 [shape = 's32[1]{0}', space=sflag, size = 0x4, scoped, tag = 'scoped memory for worker_forward.1']
    #allocation5 [shape = 'u8[4096]{0}', space=vmem, size = 0x1000, scoped, tag = 'input window, operand 1, single buffered']
    #allocation6 [shape = 's32[1]{0}', space=sflag, size = 0x4, scoped, tag = 'scoped memory for worker_forward.1']
    #allocation7 [shape = 'u8[12288]{0}', space=vmem, size = 0x3000, scoped, tag = 'input window, operand 3, single buffered']
    #allocation8 [shape = 'u8[98304]{0}', space=vmem, size = 0x18000, scoped, tag = 'input window, operand 5, single buffered']
    #allocation9 [shape = 's32[1]{0}', space=sflag, size = 0x4, scoped, tag = 'scoped memory for worker_forward.1']
    #allocation10 [shape = 'u8[1536]{0}', space=vmem, size = 0x800, scoped, tag = 'input window, operand 6, single buffered']
    #allocation11 [shape = 'u8[32768]{0}', space=vmem, size = 0x8000, scoped, tag = 'input window, operand 8, single buffered']
    #allocation12 [shape = 's32[1]{0}', space=sflag, size = 0x4, scoped, tag = 'scoped memory for worker_forward.1']
    #allocation13 [shape = 'u8[2048]{0}', space=vmem, size = 0x800, scoped, tag = 'output window, operand 0, single buffered']
    %17 = vsyncpa [#allocation3], 0
    %18 = vsyncpa [#allocation6], 0
    %19 = vsyncpa [#allocation9], 0
    %20 = vsyncpa [#allocation12], 0
    %21 = vsyncpa [#allocation4], 0
    // Predicated region
    $region2: #{worker_forward.1} parent=1 // pred_check
      _
    $region3: #{worker_forward.1} parent=1 // pred_check_branch
      %23 = sbr.rel (0) target = $region5
    $region4: #{worker_forward.1} parent=1 // pred_region
      %s25 = ssub.s32 128, 128
      %26 = vsyncadd [#allocation3], %s25
      %s28 = sshll.u32 [#allocation2], 4
      %s29 = int_to_ptr.vmem [resolvable:$true] %s28
      %31 = dma.hbm_to_vmem [thread:$0]  %s0, 128, %s29, [#allocation3]
    $region5: #{worker_forward.1} parent=1 // pred_fallthru
      _
    // Predicated region
    $region6: #{worker_forward.1} parent=1 // pred_check
      _
    $region7: #{worker_forward.1} parent=1 // pred_check_branch
      %33 = sbr.rel (0) target = $region9
    $region8: #{worker_forward.1} parent=1 // pred_region
      %s35 = ssub.s32 128, 128
      %36 = vsyncadd [#allocation6], %s35
      %s38 = sshll.u32 [#allocation5], 4
      %s39 = int_to_ptr.vmem [resolvable:$true] %s38
      %41 = dma.hbm_to_vmem [thread:$0]  %s1, 128, %s39, [#allocation6]
    $region9: #{worker_forward.1} parent=1 // pred_fallthru
      _
    // Predicated region
    $region10: #{worker_forward.1} parent=1 // pred_check
      _
    $region11: #{worker_forward.1} parent=1 // pred_check_branch
      %43 = sbr.rel (0) target = $region13
    $region12: #{worker_forward.1} parent=1 // pred_region
      _
    $region13: #{worker_forward.1} parent=1 // pred_fallthru
      _
    // Predicated region
    $region14: #{worker_forward.1} parent=1 // pred_check
      _
    $region15: #{worker_forward.1} parent=1 // pred_check_branch
      %45 = sbr.rel (0) target = $region17
    $region16: #{worker_forward.1} parent=1 // pred_region
      %s47 = ssub.s32 384, 384
      %48 = vsyncadd [#allocation6], %s47
      %s49 = sshll.u32 [#allocation7], 4
      %s50 = int_to_ptr.vmem [resolvable:$true] %s49
      %55 = dma.hbm_to_vmem [thread:$0]  %s3, 384, %s50, [#allocation6], 192, 192, 12
    $region17: #{worker_forward.1} parent=1 // pred_fallthru
      _
    // Predicated region
    $region18: #{worker_forward.1} parent=1 // pred_check
      _
    $region19: #{worker_forward.1} parent=1 // pred_check_branch
      %57 = sbr.rel (0) target = $region21
    $region20: #{worker_forward.1} parent=1 // pred_region
      _
    $region21: #{worker_forward.1} parent=1 // pred_fallthru
      _
    // Predicated region
    $region22: #{worker_forward.1} parent=1 // pred_check
      _
    $region23: #{worker_forward.1} parent=1 // pred_check_branch
      %59 = sbr.rel (0) target = $region25
    $region24: #{worker_forward.1} parent=1 // pred_region
      %s61 = ssub.s32 3072, 3072
      %62 = vsyncadd [#allocation9], %s61
      %s63 = sshll.u32 [#allocation8], 4
      %s64 = int_to_ptr.vmem [resolvable:$true] %s63
      %69 = dma.hbm_to_vmem [thread:$0]  %s5, 3072, %s64, [#allocation9], 192, 192, 12
    $region25: #{worker_forward.1} parent=1 // pred_fallthru
      _
    // Predicated region
    $region26: #{worker_forward.1} parent=1 // pred_check
      _
    $region27: #{worker_forward.1} parent=1 // pred_check_branch
      %71 = sbr.rel (0) target = $region29
    $region28: #{worker_forward.1} parent=1 // pred_region
      %s73 = ssub.s32 48, 48
      %74 = vsyncadd [#allocation9], %s73
      %s76 = sshll.u32 [#allocation10], 4
      %s77 = int_to_ptr.vmem [resolvable:$true] %s76
      %79 = dma.hbm_to_vmem [thread:$0]  %s6, 48, %s77, [#allocation9]
    $region29: #{worker_forward.1} parent=1 // pred_fallthru
      _
    // Predicated region
    $region30: #{worker_forward.1} parent=1 // pred_check
      _
    $region31: #{worker_forward.1} parent=1 // pred_check_branch
      %81 = sbr.rel (0) target = $region33
    $region32: #{worker_forward.1} parent=1 // pred_region
      _
    $region33: #{worker_forward.1} parent=1 // pred_fallthru
      _
    // Predicated region
    $region34: #{worker_forward.1} parent=1 // pred_check
      _
    $region35: #{worker_forward.1} parent=1 // pred_check_branch
      %83 = sbr.rel (0) target = $region37
    $region36: #{worker_forward.1} parent=1 // pred_region
      %s85 = ssub.s32 1024, 1024
      %86 = vsyncadd [#allocation12], %s85
      %s87 = sshll.u32 [#allocation11], 4
      %s88 = int_to_ptr.vmem [resolvable:$true] %s87
      %93 = dma.hbm_to_vmem [thread:$0]  %s8, 1024, %s88, [#allocation12], 64, 64, 4
    $region37: #{worker_forward.1} parent=1 // pred_fallthru
      _
    // Predicated region
    $region38: #{worker_forward.1} parent=1 // pred_check
      _
    $region39: #{worker_forward.1} parent=1 // pred_check_branch
      %95 = sbr.rel (0) target = $region41
    $region40: #{worker_forward.1} parent=1 // pred_region
      _
    $region41: #{worker_forward.1} parent=1 // pred_fallthru
      _
    // Predicated region
    $region42: #{worker_forward.1} parent=1 // pred_check
      _
    $region43: #{worker_forward.1} parent=1 // pred_check_branch
      %97 = sbr.rel (0) target = $region45
    $region44: #{worker_forward.1} parent=1 // pred_region
      %98 = dma.done [#allocation3], 128
    $region45: #{worker_forward.1} parent=1 // pred_fallthru
      _
    // Predicated region
    $region46: #{worker_forward.1} parent=1 // pred_check
      _
    $region47: #{worker_forward.1} parent=1 // pred_check_branch
      %100 = sbr.rel (0) target = $region49
    $region48: #{worker_forward.1} parent=1 // pred_region
      %101 = dma.done [#allocation6], 128
    $region49: #{worker_forward.1} parent=1 // pred_fallthru
      _
    // Predicated region
    $region50: #{worker_forward.1} parent=1 // pred_check
      _
    $region51: #{worker_forward.1} parent=1 // pred_check_branch
      %103 = sbr.rel (0) target = $region53
    $region52: #{worker_forward.1} parent=1 // pred_region
      %104 = dma.done [#allocation6], 384
    $region53: #{worker_forward.1} parent=1 // pred_fallthru
      _
    // Predicated region
    $region54: #{worker_forward.1} parent=1 // pred_check
      _
    $region55: #{worker_forward.1} parent=1 // pred_check_branch
      %106 = sbr.rel (0) target = $region57
    $region56: #{worker_forward.1} parent=1 // pred_region
      %107 = dma.done [#allocation9], 3072
    $region57: #{worker_forward.1} parent=1 // pred_fallthru
      _
    // Predicated region
    $region58: #{worker_forward.1} parent=1 // pred_check
      _
    $region59: #{worker_forward.1} parent=1 // pred_check_branch
      %109 = sbr.rel (0) target = $region61
    $region60: #{worker_forward.1} parent=1 // pred_region
      %110 = dma.done [#allocation9], 48
    $region61: #{worker_forward.1} parent=1 // pred_fallthru
      _
    // Predicated region
    $region62: #{worker_forward.1} parent=1 // pred_check
      _
    $region63: #{worker_forward.1} parent=1 // pred_check_branch
      %112 = sbr.rel (0) target = $region65
    $region64: #{worker_forward.1} parent=1 // pred_region
      %113 = dma.done [#allocation12], 1024
    $region65: #{worker_forward.1} parent=1 // pred_fallthru
      _
    %v115 = vld [vmem:[%s2] sm:$0xf]
    %v116 = vld [vmem:[#allocation2] sm:$0xff]
    %v117 = vpack.c.bf16 %v116, %v116
    %v118 = vld [vmem:[#allocation5] sm:$0xff]
    %v119 = vpack.c.bf16 %v118, %v118
    %v120 = vld [vmem:[#allocation7] sm:$0xff]
    %v121 = vld [vmem:[#allocation7 + $0x8] sm:$0xf]
    %v122 = vld [vmem:[#allocation7 + $0xc] sm:$0x33]
    %v123 = vld [vmem:[#allocation7 + $0x14] sm:$0x3]
    %v124 = vld [vmem:[%s4] sm:$0x3f]
    %v126 = vcombine.high %v124, %v124
    %v128 = vunpack.c.l.s4 1983009808
    %v129 = vunpack.c.0.s8 %v128
    %v130 = vlaneseq
    %v131 = vshrl.u32 %v130, 7
    %v132 = vsub.s32 %v129, %v131
    %v133 = vrot.slane %v124, %v132
    %v135 = vunpack.c.l.s4 1983009808
    %v136 = vunpack.c.0.s8 %v135
    %v137 = vlaneseq
    %v138 = vshrl.u32 %v137, 7
    %v139 = vsub.s32 %v136, %v138
    %v140 = vrot.slane %v126, %v139
    %v141 = vcombine.high %v133, %v133
    %vm142 = vcmask 31744
    %v144 = vsel %vm142, %v119, 0
    %vm146 = vcmask 1041408
    %v148 = vsel %vm146, %v133, 0
    %v151 = vsel %vm146, %v141, 0
    %v154 = vsel %vm146, %v140, 0
    %156 = vmatprep.subr.bf16.mxu0 0
    %157 = vmatpush1.bf16.msra.mxu0 0
    %158 = vmatprep.subr.bf16.mxu0 0
    %159 = vmatpush1.bf16.msra.mxu0 0
    %160 = vmatprep.subr.bf16.mxu0 0
    %161 = vmatpush1.bf16.msra.mxu0 0
    %162 = vmatprep.subr.bf16.mxu0 0
    %163 = vmatpush1.bf16.msra.mxu0 0
    %164 = vmatprep.subr.bf16.mxu0 0
    %165 = vmatpush1.bf16.msra.mxu0 0
    %166 = vmatprep.subr.bf16.mxu0 0
    %167 = vmatpush1.bf16.msra.mxu0 0
    %168 = vmatprep.subr.bf16.mxu0 0
    %169 = vmatpush1.bf16.msra.mxu0 0
    %170 = vmatprep.subr.bf16.mxu0 %v151
    %171 = vmatpush1.bf16.msra.mxu0 %v148
    %172 = vmatprep.subr.bf16.mxu0 0
    %173 = vmatpush2.bf16.msra.mxu0 0
    %174 = vmatprep.subr.bf16.mxu0 0
    %175 = vmatpush2.bf16.msra.mxu0 0
    %176 = vmatprep.subr.bf16.mxu0 0
    %177 = vmatpush2.bf16.msra.mxu0 0
    %178 = vmatprep.subr.bf16.mxu0 0
    %179 = vmatpush2.bf16.msra.mxu0 0
    %180 = vmatprep.subr.bf16.mxu0 0
    %181 = vmatpush2.bf16.msra.mxu0 0
    %182 = vmatprep.subr.bf16.mxu0 0
    %183 = vmatpush2.bf16.msra.mxu0 0
    %184 = vmatprep.subr.bf16.mxu0 0
    %185 = vmatpush2.bf16.msra.mxu0 0
    %186 = vmatprep.subr.bf16.mxu0 0
    %187 = vmatpush2.bf16.msra.mxu0 0
    %188 = vmatprep.mubr.bf16.mxu0 0
    %189 = vmatmul.mubr.bf16.gmra.mxu0 %v144
    %v190 = vpop.f32.mrf.mxu0
    %v191 = vadd.f32 0.0, %v190
    %v192 = vpop.f32.mrf.mxu0
    %v193 = vadd.f32 0.0, %v192
    %v194 = vpop.f32.mrf.mxu0
    %v195 = vpop.f32.mrf.mxu0
    %196 = vdwg.mxu0
    %197 = vmatprep.subr.bf16.mxu0 0
    %198 = vmatpush1.bf16.msra.mxu0 0
    %199 = vmatprep.subr.bf16.mxu0 0
    %200 = vmatpush1.bf16.msra.mxu0 0
    %201 = vmatprep.subr.bf16.mxu0 0
    %202 = vmatpush1.bf16.msra.mxu0 0
    %203 = vmatprep.subr.bf16.mxu0 0
    %204 = vmatpush1.bf16.msra.mxu0 0
    %205 = vmatprep.subr.bf16.mxu0 0
    %206 = vmatpush1.bf16.msra.mxu0 0
    %207 = vmatprep.subr.bf16.mxu0 0
    %208 = vmatpush1.bf16.msra.mxu0 0
    %209 = vmatprep.subr.bf16.mxu0 0
    %210 = vmatpush1.bf16.msra.mxu0 0
    %211 = vmatprep.subr.bf16.mxu0 0
    %212 = vmatpush1.bf16.msra.mxu0 %v154
    %213 = vmatprep.subr.bf16.mxu0 0
    %214 = vmatpush2.bf16.msra.mxu0 0
    %215 = vmatprep.subr.bf16.mxu0 0
    %216 = vmatpush2.bf16.msra.mxu0 0
    %217 = vmatprep.subr.bf16.mxu0 0
    %218 = vmatpush2.bf16.msra.mxu0 0
    %219 = vmatprep.subr.bf16.mxu0 0
    %220 = vmatpush2.bf16.msra.mxu0 0
    %221 = vmatprep.subr.bf16.mxu0 0
    %222 = vmatpush2.bf16.msra.mxu0 0
    %223 = vmatprep.subr.bf16.mxu0 0
    %224 = vmatpush2.bf16.msra.mxu0 0
    %225 = vmatprep.subr.bf16.mxu0 0
    %226 = vmatpush2.bf16.msra.mxu0 0
    %227 = vmatprep.subr.bf16.mxu0 0
    %228 = vmatpush2.bf16.msra.mxu0 0
    %229 = vmatprep.mubr.bf16.mxu0 0
    %230 = vmatmul.mubr.bf16.gmra.mxu0 %v144
    %v231 = vpop.f32.mrf.mxu0
    %v232 = vadd.f32 0.0, %v231
    %v233 = vpop.f32.mrf.mxu0
    %v234 = vpop.f32.mrf.mxu0
    %v235 = vpop.f32.mrf.mxu0
    %236 = vdwg.mxu0
    %v241 = vunpack.c.l.b16 %v120
    %v242 = vunpack.c.h.b16 %v120
    %v243 = vunpack.c.l.b16 %v121
    %v244 = vunpack.c.l.b16 %v122
    %v245 = vunpack.c.h.b16 %v122
    %v246 = vunpack.c.l.b16 %v123
    %v247 = vpack.c.b16 %v244, %v241
    %v248 = vpack.c.b16 %v245, %v242
    %v249 = vpack.c.b16 %v246, %v243
    %vm250 = vcmask 97280
    %v252 = vsel %vm250, %v117, 0
    %vm254 = vcmask 1045504
    %v256 = vsel %vm254, %v247, 0
    %v259 = vsel %vm254, %v248, 0
    %v262 = vsel %vm254, %v249, 0
    %264 = vmatprep.subr.bf16.mxu0 0
    %265 = vmatpush1.bf16.msra.mxu0 0
    %266 = vmatprep.subr.bf16.mxu0 0
    %267 = vmatpush1.bf16.msra.mxu0 0
    %268 = vmatprep.subr.bf16.mxu0 0
    %269 = vmatpush1.bf16.msra.mxu0 0
    %270 = vmatprep.subr.bf16.mxu0 0
    %271 = vmatpush1.bf16.msra.mxu0 0
    %272 = vmatprep.subr.bf16.mxu0 0
    %273 = vmatpush1.bf16.msra.mxu0 0
    %274 = vmatprep.subr.bf16.mxu0 0
    %275 = vmatpush1.bf16.msra.mxu0 0
    %276 = vmatprep.subr.bf16.mxu0 0
    %277 = vmatpush1.bf16.msra.mxu0 0
    %278 = vmatprep.subr.bf16.mxu0 %v259
    %279 = vmatpush1.bf16.msra.mxu0 %v256
    %280 = vmatprep.subr.bf16.mxu0 0
    %281 = vmatpush2.bf16.msra.mxu0 0
    %282 = vmatprep.subr.bf16.mxu0 0
    %283 = vmatpush2.bf16.msra.mxu0 0
    %284 = vmatprep.subr.bf16.mxu0 0
    %285 = vmatpush2.bf16.msra.mxu0 0
    %286 = vmatprep.subr.bf16.mxu0 0
    %287 = vmatpush2.bf16.msra.mxu0 0
    %288 = vmatprep.subr.bf16.mxu0 0
    %289 = vmatpush2.bf16.msra.mxu0 0
    %290 = vmatprep.subr.bf16.mxu0 0
    %291 = vmatpush2.bf16.msra.mxu0 0
    %292 = vmatprep.subr.bf16.mxu0 0
    %293 = vmatpush2.bf16.msra.mxu0 0
    %294 = vmatprep.subr.bf16.mxu0 0
    %295 = vmatpush2.bf16.msra.mxu0 0
    %296 = vmatprep.mubr.bf16.mxu0 0
    %297 = vmatmul.mubr.bf16.gmra.mxu0 %v252
    %v298 = vpop.f32.mrf.mxu0
    %v299 = vadd.f32 %v191, %v298
    %v300 = vpop.f32.mrf.mxu0
    %v301 = vadd.f32 %v193, %v300
    %v302 = vpop.f32.mrf.mxu0
    %v303 = vpop.f32.mrf.mxu0
    %304 = vdwg.mxu0
    %305 = vmatprep.subr.bf16.mxu0 0
    %306 = vmatpush1.bf16.msra.mxu0 0
    %307 = vmatprep.subr.bf16.mxu0 0
    %308 = vmatpush1.bf16.msra.mxu0 0
    %309 = vmatprep.subr.bf16.mxu0 0
    %310 = vmatpush1.bf16.msra.mxu0 0
    %311 = vmatprep.subr.bf16.mxu0 0
    %312 = vmatpush1.bf16.msra.mxu0 0
    %313 = vmatprep.subr.bf16.mxu0 0
    %314 = vmatpush1.bf16.msra.mxu0 0
    %315 = vmatprep.subr.bf16.mxu0 0
    %316 = vmatpush1.bf16.msra.mxu0 0
    %317 = vmatprep.subr.bf16.mxu0 0
    %318 = vmatpush1.bf16.msra.mxu0 0
    %319 = vmatprep.subr.bf16.mxu0 0
    %320 = vmatpush1.bf16.msra.mxu0 %v262
    %321 = vmatprep.subr.bf16.mxu0 0
    %322 = vmatpush2.bf16.msra.mxu0 0
    %323 = vmatprep.subr.bf16.mxu0 0
    %324 = vmatpush2.bf16.msra.mxu0 0
    %325 = vmatprep.subr.bf16.mxu0 0
    %326 = vmatpush2.bf16.msra.mxu0 0
    %327 = vmatprep.subr.bf16.mxu0 0
    %328 = vmatpush2.bf16.msra.mxu0 0
    %329 = vmatprep.subr.bf16.mxu0 0
    %330 = vmatpush2.bf16.msra.mxu0 0
    %331 = vmatprep.subr.bf16.mxu0 0
    %332 = vmatpush2.bf16.msra.mxu0 0
    %333 = vmatprep.subr.bf16.mxu0 0
    %334 = vmatpush2.bf16.msra.mxu0 0
    %335 = vmatprep.subr.bf16.mxu0 0
    %336 = vmatpush2.bf16.msra.mxu0 0
    %337 = vmatprep.mubr.bf16.mxu0 0
    %338 = vmatmul.mubr.bf16.gmra.mxu0 %v252
    %v339 = vpop.f32.mrf.mxu0
    %v340 = vadd.f32 %v232, %v339
    %v341 = vpop.f32.mrf.mxu0
    %v342 = vpop.f32.mrf.mxu0
    %v343 = vpop.f32.mrf.mxu0
    %344 = vdwg.mxu0
    %v345 = vld [vmem:[#allocation10] sm:$0x7]
    %v347 = vlaneseq
    %v348 = vshrl.u32 %v347, 7
    %v349 = vsub.s32 0, %v348
    %v350 = vrot.slane %v345, %v349
    %v351 = vlaneseq
    %v352 = vshrl.u32 %v351, 7
    %v353 = vsub.s32 1, %v352
    %v354 = vrot.slane %v345, %v353
    %v355 = vlaneseq
    %v356 = vshrl.u32 %v355, 7
    %v357 = vsub.s32 2, %v356
    %v358 = vrot.slane %v345, %v357
    %v362 = vadd.f32 %v299, %v350
    %v363 = vadd.f32 %v301, %v354
    %v364 = vadd.f32 %v340, %v358
    %v365 = vld [vmem:[#allocation8] sm:$0xff]
    %v366 = vld [vmem:[#allocation8 + $0x8] sm:$0xf]
    %v367 = vld [vmem:[#allocation8 + $0xc] sm:$0xff]
    %v368 = vld [vmem:[#allocation8 + $0x14] sm:$0xf]
    %v369 = vld [vmem:[#allocation8 + $0x18] sm:$0xff]
    %v370 = vld [vmem:[#allocation8 + $0x20] sm:$0xf]
    %v371 = vld [vmem:[#allocation8 + $0x24] sm:$0xff]
    %v372 = vld [vmem:[#allocation8 + $0x2c] sm:$0xf]
    %v373 = vld [vmem:[#allocation8 + $0x30] sm:$0xff]
    %v374 = vld [vmem:[#allocation8 + $0x38] sm:$0xf]
    %v375 = vld [vmem:[#allocation8 + $0x3c] sm:$0xff]
    %v376 = vld [vmem:[#allocation8 + $0x44] sm:$0xf]
    %v377 = vld [vmem:[#allocation8 + $0x48] sm:$0xff]
    %v378 = vld [vmem:[#allocation8 + $0x50] sm:$0xf]
    %v379 = vld [vmem:[#allocation8 + $0x54] sm:$0xff]
    %v380 = vld [vmem:[#allocation8 + $0x5c] sm:$0xf]
    %v381 = vld [vmem:[#allocation8 + $0x60] sm:$0xff]
    %v382 = vld [vmem:[#allocation8 + $0x68] sm:$0xf]
    %v383 = vld [vmem:[#allocation8 + $0x6c] sm:$0xff]
    %v384 = vld [vmem:[#allocation8 + $0x74] sm:$0xf]
    %v385 = vld [vmem:[#allocation8 + $0x78] sm:$0xff]
    %v386 = vld [vmem:[#allocation8 + $0x80] sm:$0xf]
    %v387 = vld [vmem:[#allocation8 + $0x84] sm:$0xff]
    %v388 = vld [vmem:[#allocation8 + $0x8c] sm:$0xf]
    %v389 = vld [vmem:[#allocation8 + $0x90] sm:$0xff]
    %v390 = vld [vmem:[#allocation8 + $0x98] sm:$0xf]
    %v391 = vld [vmem:[#allocation8 + $0x9c] sm:$0xff]
    %v392 = vld [vmem:[#allocation8 + $0xa4] sm:$0xf]
    %v393 = vld [vmem:[#allocation8 + $0xa8] sm:$0xff]
    %v394 = vld [vmem:[#allocation8 + $0xb0] sm:$0xf]
    %v395 = vld [vmem:[#allocation8 + $0xb4] sm:$0xff]
    %v396 = vld [vmem:[#allocation8 + $0xbc] sm:$0xf]
    %v429 = vunpack.c.l.b16 %v365
    %v430 = vunpack.c.h.b16 %v365
    %v431 = vunpack.c.l.b16 %v366
    %v432 = vunpack.c.l.b16 %v367
    %v433 = vunpack.c.h.b16 %v367
    %v434 = vunpack.c.l.b16 %v368
    %v435 = vunpack.c.l.b16 %v369
    %v436 = vunpack.c.h.b16 %v369
    %v437 = vunpack.c.l.b16 %v370
    %v438 = vunpack.c.l.b16 %v371
    %v439 = vunpack.c.h.b16 %v371
    %v440 = vunpack.c.l.b16 %v372
    %v441 = vunpack.c.l.b16 %v373
    %v442 = vunpack.c.h.b16 %v373
    %v443 = vunpack.c.l.b16 %v374
    %v444 = vunpack.c.l.b16 %v375
    %v445 = vunpack.c.h.b16 %v375
    %v446 = vunpack.c.l.b16 %v376
    %v447 = vunpack.c.l.b16 %v377
    %v448 = vunpack.c.h.b16 %v377
    %v449 = vunpack.c.l.b16 %v378
    %v450 = vunpack.c.l.b16 %v379
    %v451 = vunpack.c.h.b16 %v379
    %v452 = vunpack.c.l.b16 %v380
    %v453 = vunpack.c.l.b16 %v381
    %v454 = vunpack.c.h.b16 %v381
    %v455 = vunpack.c.l.b16 %v382
    %v456 = vunpack.c.l.b16 %v383
    %v457 = vunpack.c.h.b16 %v383
    %v458 = vunpack.c.l.b16 %v384
    %v459 = vunpack.c.l.b16 %v385
    %v460 = vunpack.c.h.b16 %v385
    %v461 = vunpack.c.l.b16 %v386
    %v462 = vunpack.c.l.b16 %v387
    %v463 = vunpack.c.h.b16 %v387
    %v464 = vunpack.c.l.b16 %v388
    %v465 = vunpack.c.l.b16 %v389
    %v466 = vunpack.c.h.b16 %v389
    %v467 = vunpack.c.l.b16 %v390
    %v468 = vunpack.c.l.b16 %v391
    %v469 = vunpack.c.h.b16 %v391
    %v470 = vunpack.c.l.b16 %v392
    %v471 = vunpack.c.l.b16 %v393
    %v472 = vunpack.c.h.b16 %v393
    %v473 = vunpack.c.l.b16 %v394
    %v474 = vunpack.c.l.b16 %v395
    %v475 = vunpack.c.h.b16 %v395
    %v476 = vunpack.c.l.b16 %v396
    %v477 = vpack.c.b16 %v432, %v429
    %v478 = vpack.c.b16 %v433, %v430
    %v479 = vpack.c.b16 %v434, %v431
    %v480 = vpack.c.b16 %v438, %v435
    %v481 = vpack.c.b16 %v439, %v436
    %v482 = vpack.c.b16 %v440, %v437
    %v483 = vpack.c.b16 %v444, %v441
    %v484 = vpack.c.b16 %v445, %v442
    %v485 = vpack.c.b16 %v446, %v443
    %v486 = vpack.c.b16 %v450, %v447
    %v487 = vpack.c.b16 %v451, %v448
    %v488 = vpack.c.b16 %v452, %v449
    %v489 = vpack.c.b16 %v456, %v453
    %v490 = vpack.c.b16 %v457, %v454
    %v491 = vpack.c.b16 %v458, %v455
    %v492 = vpack.c.b16 %v462, %v459
    %v493 = vpack.c.b16 %v463, %v460
    %v494 = vpack.c.b16 %v464, %v461
    %v495 = vpack.c.b16 %v468, %v465
    %v496 = vpack.c.b16 %v469, %v466
    %v497 = vpack.c.b16 %v470, %v467
    %v498 = vpack.c.b16 %v474, %v471
    %v499 = vpack.c.b16 %v475, %v472
    %v500 = vpack.c.b16 %v476, %v473
    %525 = vmatprep.subr.bf16.mxu0 %v499
    %526 = vmatpush1.bf16.msra.mxu0 %v498
    %527 = vmatprep.subr.bf16.mxu0 %v496
    %528 = vmatpush1.bf16.msra.mxu0 %v495
    %529 = vmatprep.subr.bf16.mxu0 %v493
    %530 = vmatpush1.bf16.msra.mxu0 %v492
    %531 = vmatprep.subr.bf16.mxu0 %v490
    %532 = vmatpush1.bf16.msra.mxu0 %v489
    %533 = vmatprep.subr.bf16.mxu0 %v487
    %534 = vmatpush1.bf16.msra.mxu0 %v486
    %535 = vmatprep.subr.bf16.mxu0 %v484
    %536 = vmatpush1.bf16.msra.mxu0 %v483
    %537 = vmatprep.subr.bf16.mxu0 %v481
    %538 = vmatpush1.bf16.msra.mxu0 %v480
    %539 = vmatprep.subr.bf16.mxu0 %v478
    %540 = vmatpush1.bf16.msra.mxu0 %v477
    %541 = vmatprep.subr.bf16.mxu0 0
    %542 = vmatpush2.bf16.msra.mxu0 0
    %543 = vmatprep.subr.bf16.mxu0 0
    %544 = vmatpush2.bf16.msra.mxu0 0
    %545 = vmatprep.subr.bf16.mxu0 0
    %546 = vmatpush2.bf16.msra.mxu0 0
    %547 = vmatprep.subr.bf16.mxu0 0
    %548 = vmatpush2.bf16.msra.mxu0 0
    %549 = vmatprep.subr.bf16.mxu0 0
    %550 = vmatpush2.bf16.msra.mxu0 0
    %551 = vmatprep.subr.bf16.mxu0 0
    %552 = vmatpush2.bf16.msra.mxu0 0
    %553 = vmatprep.subr.bf16.mxu0 0
    %554 = vmatpush2.bf16.msra.mxu0 0
    %555 = vmatprep.subr.bf16.mxu0 0
    %556 = vmatpush2.bf16.msra.mxu0 0
    %557 = vmatprep.mubr.bf16.mxu0 0
    %558 = vmatmul.mubr.bf16.gmra.mxu0 %v115
    %v559 = vpop.f32.mrf.mxu0
    %v560 = vadd.f32 0.0, %v559
    %v561 = vpop.f32.mrf.mxu0
    %v562 = vadd.f32 0.0, %v561
    %v563 = vpop.f32.mrf.mxu0
    %v564 = vpop.f32.mrf.mxu0
    %565 = vdwg.mxu0
    %566 = vmatprep.subr.bf16.mxu0 0
    %567 = vmatpush1.bf16.msra.mxu0 %v500
    %568 = vmatprep.subr.bf16.mxu0 0
    %569 = vmatpush1.bf16.msra.mxu0 %v497
    %570 = vmatprep.subr.bf16.mxu0 0
    %571 = vmatpush1.bf16.msra.mxu0 %v494
    %572 = vmatprep.subr.bf16.mxu0 0
    %573 = vmatpush1.bf16.msra.mxu0 %v491
    %574 = vmatprep.subr.bf16.mxu0 0
    %575 = vmatpush1.bf16.msra.mxu0 %v488
    %576 = vmatprep.subr.bf16.mxu0 0
    %577 = vmatpush1.bf16.msra.mxu0 %v485
    %578 = vmatprep.subr.bf16.mxu0 0
    %579 = vmatpush1.bf16.msra.mxu0 %v482
    %580 = vmatprep.subr.bf16.mxu0 0
    %581 = vmatpush1.bf16.msra.mxu0 %v479
    %582 = vmatprep.subr.bf16.mxu0 0
    %583 = vmatpush2.bf16.msra.mxu0 0
    %584 = vmatprep.subr.bf16.mxu0 0
    %585 = vmatpush2.bf16.msra.mxu0 0
    %586 = vmatprep.subr.bf16.mxu0 0
    %587 = vmatpush2.bf16.msra.mxu0 0
    %588 = vmatprep.subr.bf16.mxu0 0
    %589 = vmatpush2.bf16.msra.mxu0 0
    %590 = vmatprep.subr.bf16.mxu0 0
    %591 = vmatpush2.bf16.msra.mxu0 0
    %592 = vmatprep.subr.bf16.mxu0 0
    %593 = vmatpush2.bf16.msra.mxu0 0
    %594 = vmatprep.subr.bf16.mxu0 0
    %595 = vmatpush2.bf16.msra.mxu0 0
    %596 = vmatprep.subr.bf16.mxu0 0
    %597 = vmatpush2.bf16.msra.mxu0 0
    %598 = vmatprep.mubr.bf16.mxu0 0
    %599 = vmatmul.mubr.bf16.gmra.mxu0 %v115
    %v600 = vpop.f32.mrf.mxu0
    %v601 = vadd.f32 0.0, %v600
    %v602 = vpop.f32.mrf.mxu0
    %v603 = vpop.f32.mrf.mxu0
    %v604 = vpop.f32.mrf.mxu0
    %605 = vdwg.mxu0
    %v606 = vadd.f32 %v362, %v560
    %v607 = vxor.u32 %v606, 2147483648
    %v608 = vmul.f32 %v607, 1.442695
    %v609 = vpow.pop %v608
    %v610 = vadd.f32 %v609, 1.0
    %v611 = vrcp.pop %v610
    %v612 = vmul.f32 1.0, %v611
    %v613 = vadd.f32 %v363, %v562
    %v614 = vxor.u32 %v613, 2147483648
    %v615 = vmul.f32 %v614, 1.442695
    %v616 = vpow.pop %v615
    %v617 = vadd.f32 %v616, 1.0
    %v618 = vrcp.pop %v617
    %v619 = vmul.f32 1.0, %v618
    %v620 = vld [vmem:[%s7] sm:$0x1]
    %v622 = vlaneseq
    %v623 = vshrl.u32 %v622, 7
    %v624 = vsub.s32 0, %v623
    %v625 = vrot.slane %v620, %v624
    %v627 = vadd.f32 %v601, %v625
    %v628 = vmul.f32 %v612, %v627
    %v629 = vadd.f32 %v364, %v628
    %v630 = vtanh.pop %v629
    %v631 = vsub.f32 1.0, %v619
    %v632 = vmul.f32 %v631, %v630
    %v633 = vunpack.c.l.bf16 %v115
    %v634 = vmul.f32 %v619, %v633
    %v635 = vadd.f32 %v632, %v634
    %v636 = vpack.c.bf16 %v635, %v635
    %v637 = vld [vmem:[#allocation11] sm:$0xf]
    %v638 = vld [vmem:[#allocation11 + $0x4] sm:$0xf]
    %v639 = vld [vmem:[#allocation11 + $0x8] sm:$0xf]
    %v640 = vld [vmem:[#allocation11 + $0xc] sm:$0xf]
    %v641 = vld [vmem:[#allocation11 + $0x10] sm:$0xf]
    %v642 = vld [vmem:[#allocation11 + $0x14] sm:$0xf]
    %v643 = vld [vmem:[#allocation11 + $0x18] sm:$0xf]
    %v644 = vld [vmem:[#allocation11 + $0x1c] sm:$0xf]
    %v645 = vld [vmem:[#allocation11 + $0x20] sm:$0xf]
    %v646 = vld [vmem:[#allocation11 + $0x24] sm:$0xf]
    %v647 = vld [vmem:[#allocation11 + $0x28] sm:$0xf]
    %v648 = vld [vmem:[#allocation11 + $0x2c] sm:$0xf]
    %v649 = vld [vmem:[#allocation11 + $0x30] sm:$0xf]
    %v650 = vld [vmem:[#allocation11 + $0x34] sm:$0xf]
    %v651 = vld [vmem:[#allocation11 + $0x38] sm:$0xf]
    %v652 = vld [vmem:[#allocation11 + $0x3c] sm:$0xf]
    %v653 = vld [vmem:[%s9] sm:$0x1]
    %v655 = vlaneseq
    %v656 = vshrl.u32 %v655, 7
    %v657 = vsub.s32 0, %v656
    %v658 = vrot.slane %v653, %v657
    %v676 = vunpack.c.l.b16 %v637
    %v677 = vunpack.c.l.b16 %v638
    %v678 = vunpack.c.l.b16 %v639
    %v679 = vunpack.c.l.b16 %v640
    %v680 = vunpack.c.l.b16 %v641
    %v681 = vunpack.c.l.b16 %v642
    %v682 = vunpack.c.l.b16 %v643
    %v683 = vunpack.c.l.b16 %v644
    %v684 = vunpack.c.l.b16 %v645
    %v685 = vunpack.c.l.b16 %v646
    %v686 = vunpack.c.l.b16 %v647
    %v687 = vunpack.c.l.b16 %v648
    %v688 = vunpack.c.l.b16 %v649
    %v689 = vunpack.c.l.b16 %v650
    %v690 = vunpack.c.l.b16 %v651
    %v691 = vunpack.c.l.b16 %v652
    %v692 = vpack.c.b16 %v677, %v676
    %v693 = vpack.c.b16 %v679, %v678
    %v694 = vpack.c.b16 %v681, %v680
    %v695 = vpack.c.b16 %v683, %v682
    %v696 = vpack.c.b16 %v685, %v684
    %v697 = vpack.c.b16 %v687, %v686
    %v698 = vpack.c.b16 %v689, %v688
    %v699 = vpack.c.b16 %v691, %v690
    %708 = vmatprep.subr.bf16.mxu0 0
    %709 = vmatpush1.bf16.msra.mxu0 %v699
    %710 = vmatprep.subr.bf16.mxu0 0
    %711 = vmatpush1.bf16.msra.mxu0 %v698
    %712 = vmatprep.subr.bf16.mxu0 0
    %713 = vmatpush1.bf16.msra.mxu0 %v697
    %714 = vmatprep.subr.bf16.mxu0 0
    %715 = vmatpush1.bf16.msra.mxu0 %v696
    %716 = vmatprep.subr.bf16.mxu0 0
    %717 = vmatpush1.bf16.msra.mxu0 %v695
    %718 = vmatprep.subr.bf16.mxu0 0
    %719 = vmatpush1.bf16.msra.mxu0 %v694
    %720 = vmatprep.subr.bf16.mxu0 0
    %721 = vmatpush1.bf16.msra.mxu0 %v693
    %722 = vmatprep.subr.bf16.mxu0 0
    %723 = vmatpush1.bf16.msra.mxu0 %v692
    %724 = vmatprep.subr.bf16.mxu0 0
    %725 = vmatpush2.bf16.msra.mxu0 0
    %726 = vmatprep.subr.bf16.mxu0 0
    %727 = vmatpush2.bf16.msra.mxu0 0
    %728 = vmatprep.subr.bf16.mxu0 0
    %729 = vmatpush2.bf16.msra.mxu0 0
    %730 = vmatprep.subr.bf16.mxu0 0
    %731 = vmatpush2.bf16.msra.mxu0 0
    %732 = vmatprep.subr.bf16.mxu0 0
    %733 = vmatpush2.bf16.msra.mxu0 0
    %734 = vmatprep.subr.bf16.mxu0 0
    %735 = vmatpush2.bf16.msra.mxu0 0
    %736 = vmatprep.subr.bf16.mxu0 0
    %737 = vmatpush2.bf16.msra.mxu0 0
    %738 = vmatprep.subr.bf16.mxu0 0
    %739 = vmatpush2.bf16.msra.mxu0 0
    %740 = vmatprep.mubr.bf16.mxu0 0
    %741 = vmatmul.mubr.bf16.gmra.mxu0 %v636
    %v742 = vpop.f32.mrf.mxu0
    %v743 = vadd.f32 %v658, %v742
    %v744 = vpop.f32.mrf.mxu0
    %v745 = vpop.f32.mrf.mxu0
    %v746 = vpop.f32.mrf.mxu0
    %747 = vdwg.mxu0
    %748 = vst [vmem:[%s11] sm:$0xf] %v636
    %v749 = vpack.c.bf16 %v743, %v743
    %750 = vst [vmem:[#allocation13] sm:$0xf] %v749
    // Predicated region
    $region66: #{worker_forward.1} parent=1 // pred_check
      _
    $region67: #{worker_forward.1} parent=1 // pred_check_branch
      %752 = sbr.rel (0) target = $region69
    $region68: #{worker_forward.1} parent=1 // pred_region
      %s754 = ssub.s32 64, 64
      %755 = vsyncadd [#allocation4], %s754
      %s757 = sshll.u32 [#allocation13], 4
      %s758 = int_to_ptr.vmem [resolvable:$true] %s757
      %760 = dma.vmem_to_hbm [thread:$0]  %s758, 64, %s10, [#allocation4]
    $region69: #{worker_forward.1} parent=1 // pred_fallthru
      _
    // Predicated region
    $region70: #{worker_forward.1} parent=1 // pred_check
      _
    $region71: #{worker_forward.1} parent=1 // pred_check_branch
      %762 = sbr.rel (0) target = $region73
    $region72: #{worker_forward.1} parent=1 // pred_region
      _
    $region73: #{worker_forward.1} parent=1 // pred_fallthru
      _
    // Predicated region
    $region74: #{worker_forward.1} parent=1 // pred_check
      _
    $region75: #{worker_forward.1} parent=1 // pred_check_branch
      %764 = sbr.rel (0) target = $region77
    $region76: #{worker_forward.1} parent=1 // pred_region
      %765 = dma.done [#allocation4], 64
    $region77: #{worker_forward.1} parent=1 // pred_fallthru
      _
    // Predicated region
    $region78: #{worker_forward.1} parent=1 // pred_check
      _
    $region79: #{worker_forward.1} parent=1 // pred_check_branch
      %767 = sbr.rel (0) target = $region81
    $region80: #{worker_forward.1} parent=1 // pred_region
      _
    $region81: #{worker_forward.1} parent=1 // pred_fallthru
      _
    %768 = vsyncpa [#allocation3], 1
    %769 = vsyncpa [#allocation6], 1
    %770 = vsyncpa [#allocation9], 1
    %771 = vsyncpa [#allocation12], 1
    %772 = vsyncpa [#allocation4], 1

</llo_original>
